<compile_context>
chip_gen: v5e
topology: v5e:2x2
jax: 0.10.0
libtpu: 0.0.40
codegen_flags: <defaults>
</compile_context>

<pallas_src>
import functools

import jax
import jax.numpy as jnp
from jax.experimental import pallas as pl
from jax.experimental.pallas import tpu as pltpu

TRANSLATION_WEIGHT = 1.0
ROTATION_WEIGHT = 1.0

_LANE = 128
_DEFAULT_TILE_B = 65536  # lanes per grid step (multiple of 128)


def _round_up(x, m):
    return ((x + m - 1) // m) * m


def _loss_kernel(pred_ref, targ_ref, out_ref, trans_acc, rot_acc, *,
                 true_b, first_masked_tile):
    split = pl.program_id(0)
    step = pl.program_id(1)
    n_steps = pl.num_programs(1)
    tile_b = pred_ref.shape[1]

    @pl.when(step == 0)
    def _init():
        trans_acc[...] = jnp.zeros_like(trans_acc)
        rot_acc[...] = jnp.zeros_like(rot_acc)

    p = pred_ref[...].astype(jnp.float32)  # (7, tile_b), in-kernel upcast (free on VPU)
    t = targ_ref[...].astype(jnp.float32)

    def _accumulate(valid):
        # ---- translation rows 0:3: squared diffs kept per-sublane (reduced at the end) ----
        dtr = p[0:3, :] - t[0:3, :]
        sq = dtr * dtr
        # ---- rotation rows 3:7: geodesic angle of the relative rotation -------------------
        qp = p[3:7, :]
        qt = t[3:7, :]
        dot = jnp.sum(qp * qt, axis=0, keepdims=True)      # (1, tile_b)
        qp_n2 = jnp.sum(qp * qp, axis=0, keepdims=True)
        qt_n2 = jnp.sum(qt * qt, axis=0, keepdims=True)
        # Floor protects degenerate / garbage lanes from rsqrt(0) -> Inf.
        d = jnp.abs(dot) * jax.lax.rsqrt(jnp.maximum(qp_n2 * qt_n2, 1e-30))
        d = jnp.minimum(d, 1.0)
        s = jnp.sqrt(jnp.maximum(1.0 - d * d, 0.0))
        angle = 2.0 * jnp.arctan2(s, d)                     # == Rotation.magnitude()
        ang2 = angle * angle
        if valid is not None:
            # Select (NOT multiply-by-mask) so NaN/Inf garbage in unread lanes is dropped.
            sq = jnp.where(valid, sq, 0.0)
            ang2 = jnp.where(valid, ang2, 0.0)
        trans_acc[0:3, :] += sq
        rot_acc[...] += ang2

    if first_masked_tile is None:
        _accumulate(None)
    else:
        gtile = split * n_steps + step
        is_edge = gtile >= first_masked_tile

        @pl.when(jnp.logical_not(is_edge))
        def _fast():          # steady state: no iota / compare / selects
            _accumulate(None)

        @pl.when(is_edge)
        def _edge():          # partial last real tile and/or fully-masked extra tile
            lane = jax.lax.broadcasted_iota(jnp.int32, (1, tile_b), 1)
            gcol = gtile * tile_b + lane
            _accumulate(gcol < true_b)

    # Single tree reduce of the lane-dense partials, only at the last step of each split.
    @pl.when(step == n_steps - 1)
    def _fin():
        out_ref[0, 0] = jnp.sum(trans_acc[...])
        out_ref[0, 1] = jnp.sum(rot_acc[...])


def _impl(prediction, target, tile_b):
    b, c = prediction.shape
    assert c == 7 and target.shape == (b, c)

    # Only cast non-float inputs; float (f32/bf16/f16) stays as-is -> no extra HBM pass,
    # bf16 callers pay half the DMA bytes.
    if not jnp.issubdtype(prediction.dtype, jnp.floating):
        prediction = prediction.astype(jnp.float32)
    if not jnp.issubdtype(target.dtype, jnp.floating):
        target = target.astype(jnp.float32)

    # Tiny batches (< one vreg of lanes) get a negligible pad so the block never exceeds
    # the array; larger batches are never padded (edge tile handled by the in-kernel mask).
    if b < _LANE:
        prediction = jnp.pad(prediction, ((0, _LANE - b), (0, 0)))
        target = jnp.pad(target, ((0, _LANE - b), (0, 0)))
        arr_b = _LANE
    else:
        arr_b = b

    # Lane-dense [7, B] layout: one XLA transpose copy per input (no pad, no cast fused in).
    # TODO(synk): accept an already-transposed [7, B] input contract to remove this copy too.
    pred_t = prediction.T
    targ_t = target.T

    # Tile: multiple of 128, never larger than the array (so partial blocks only at the edge).
    max_tile = (arr_b // _LANE) * _LANE
    tile_b = min(_round_up(max(tile_b, 1), _LANE), max_tile)

    n_real_tiles = pl.cdiv(arr_b, tile_b)
    # Always engage the 2-way megacore split when >= 2 tiles (v7x has 2 TCs; harmless on v5e/v6e).
    n_splits = 2 if n_real_tiles >= 2 else 1
    steps = pl.cdiv(n_real_tiles, n_splits)
    total_tiles = n_splits * steps

    last_tile_partial = n_real_tiles * tile_b > b   # compare against the TRUE batch size
    has_extra = total_tiles > n_real_tiles          # rounded-up (fully masked) extra tile
    if last_tile_partial:
        first_masked_tile = n_real_tiles - 1
    elif has_extra:
        first_masked_tile = n_real_tiles
    else:
        first_masked_tile = None

    if has_extra:
        def in_idx(i, j):
            return (0, jnp.minimum(i * steps + j, n_real_tiles - 1))
    else:
        def in_idx(i, j):
            return (0, i * steps + j)

    kernel = functools.partial(_loss_kernel, true_b=b, first_masked_tile=first_masked_tile)

    partials = pl.pallas_call(
        kernel,
        out_shape=jax.ShapeDtypeStruct((n_splits, 2), jnp.float32),
        grid=(n_splits, steps),
        in_specs=[
            pl.BlockSpec((7, tile_b), in_idx),
            pl.BlockSpec((7, tile_b), in_idx),
        ],
        out_specs=pl.BlockSpec((1, 2), lambda i, j: (i, 0),
                               memory_space=pltpu.MemorySpace.SMEM),
        scratch_shapes=[
            pltpu.VMEM((8, tile_b), jnp.float32),  # translation partials (rows 0:3 used)
            pltpu.VMEM((1, tile_b), jnp.float32),  # rotation angle^2 partials (per lane)
        ],
        compiler_params=pltpu.CompilerParams(
            dimension_semantics=("parallel", "arbitrary"),
            vmem_limit_bytes=32 * 1024 * 1024,
        ),
    )(pred_t, targ_t)

    # Combine per-split partial sums; divide by the TRUE batch size.
    trans_loss = jnp.sum(partials[:, 0]) / jnp.float32(3 * b)
    rot_loss = jnp.sum(partials[:, 1]) / jnp.float32(b)
    return TRANSLATION_WEIGHT * trans_loss + ROTATION_WEIGHT * rot_loss


@functools.partial(jax.jit, static_argnames=("tile_b",))
def translation_rotation_loss(prediction, target, tile_b=_DEFAULT_TILE_B):
    return _impl(prediction, target, tile_b)


def _reference_loss(prediction, target):
    # Pure-JAX reference mirroring the PyTorch/scipy semantics.
    p = prediction.astype(jnp.float32)
    t = target.astype(jnp.float32)
    trans = jnp.mean((p[:, :3] - t[:, :3]) ** 2)
    qp = p[:, 3:]
    qt = t[:, 3:]
    qp = qp / jnp.linalg.norm(qp, axis=-1, keepdims=True)
    qt = qt / jnp.linalg.norm(qt, axis=-1, keepdims=True)
    d = jnp.clip(jnp.abs(jnp.sum(qp * qt, axis=-1)), 0.0, 1.0)
    ang = 2.0 * jnp.arctan2(jnp.sqrt(jnp.maximum(1.0 - d * d, 0.0)), d)
    return TRANSLATION_WEIGHT * trans + ROTATION_WEIGHT * jnp.mean(ang ** 2)


if __name__ == "__main__":
    key = jax.random.PRNGKey(0)
    k1, k2, k3, k4, k5, k6, k7, k8 = jax.random.split(key, 8)

    # Case 1: tiny batch (B=8) -- single tile, tiny-pad + masked edge path.
    B = 8
    pred = jax.random.normal(k1, (B, 7), dtype=jnp.float32)
    targ = jax.random.normal(k2, (B, 7), dtype=jnp.float32)
    loss = translation_rotation_loss(pred, targ)
    jax.block_until_ready(loss)
    ref = _reference_loss(pred, targ)
    assert jnp.allclose(loss, ref, rtol=1e-5, atol=1e-5), (loss, ref)

    # Case 2: 2-way split, odd real-tile count -> clamped extra tile + partial last real tile.
    B2 = 520
    pred2 = jax.random.normal(k3, (B2, 7), dtype=jnp.float32)
    targ2 = jax.random.normal(k4, (B2, 7), dtype=jnp.float32)
    loss2 = translation_rotation_loss(pred2, targ2, tile_b=128)
    jax.block_until_ready(loss2)
    ref2 = _reference_loss(pred2, targ2)
    assert jnp.allclose(loss2, ref2, rtol=2e-4, atol=1e-5), (loss2, ref2)

    # Case 3: even tile count -> clean 2-way split, mask-free steady state everywhere.
    B3 = 512
    pred3 = jax.random.normal(k5, (B3, 7), dtype=jnp.float32)
    targ3 = jax.random.normal(k6, (B3, 7), dtype=jnp.float32)
    loss3 = translation_rotation_loss(pred3, targ3, tile_b=128)
    jax.block_until_ready(loss3)
    ref3 = _reference_loss(pred3, targ3)
    assert jnp.allclose(loss3, ref3, rtol=2e-4, atol=1e-5), (loss3, ref3)

    # Case 4: bf16 inputs (no wrapper cast), 3 real tiles -> one fully-masked extra tile.
    B4 = 384
    pred4 = jax.random.normal(k7, (B4, 7), dtype=jnp.float32).astype(jnp.bfloat16)
    targ4 = jax.random.normal(k8, (B4, 7), dtype=jnp.float32).astype(jnp.bfloat16)
    loss4 = translation_rotation_loss(pred4, targ4, tile_b=128)
    jax.block_until_ready(loss4)
    ref4 = _reference_loss(pred4, targ4)
    assert jnp.allclose(loss4, ref4, rtol=1e-3, atol=1e-4), (loss4, ref4)

    print("KERNEL_OK")
</pallas_src>

<mosaic_0001>
module attributes {stable_mosaic.version = 11 : i64} {
  func.func @_loss_kernel(%arg0: i32, %arg1: i32, %arg2: memref<7x128xf32, #tpu.memory_space<vmem>>, %arg3: memref<7x128xf32, #tpu.memory_space<vmem>>, %arg4: memref<1x2xf32, #tpu.memory_space<smem>>, %arg5: memref<8x128xf32, #tpu.memory_space<vmem>>, %arg6: memref<1x128xf32, #tpu.memory_space<vmem>>) attributes {dimension_semantics = [#tpu.dimension_semantics<parallel>, #tpu.dimension_semantics<arbitrary>], iteration_bounds = array<i64: 1, 1>, scalar_prefetch = 0 : i64, scratch_operands = 2 : i64, tpu.core_type = #tpu.core_type<tc>, window_params = [{transform_indices = @transform_0, window_bounds = array<i64: 7, 128>}, {transform_indices = @transform_1, window_bounds = array<i64: 7, 128>}, {transform_indices = @transform_2, window_bounds = array<i64: 1, 2>}]} {
    %c0_i32 = arith.constant 0 : i32
    %0 = arith.cmpi eq, %arg1, %c0_i32 : i32
    %1 = arith.extui %0 : i1 to i32
    %c0_i32_0 = arith.constant 0 : i32
    %2 = arith.cmpi ne, %1, %c0_i32_0 : i32
    scf.if %2 {
      %cst = arith.constant 0.000000e+00 : f32
      %16 = vector.broadcast %cst : f32 to vector<8x128xf32>
      %c0_9 = arith.constant 0 : index
      %c0_10 = arith.constant 0 : index
      %17 = vector.load %arg5[%c0_9, %c0_10] : memref<8x128xf32, #tpu.memory_space<vmem>>, vector<8x128xf32>
      tpu.vector_store %arg5[%c0_9, %c0_10], %16 {strides = array<i32>} : memref<8x128xf32, #tpu.memory_space<vmem>>, vector<8x128xf32>,
      %cst_11 = arith.constant 0.000000e+00 : f32
      %18 = vector.broadcast %cst_11 : f32 to vector<1x128xf32>
      %c0_12 = arith.constant 0 : index
      %c0_13 = arith.constant 0 : index
      %19 = vector.load %arg6[%c0_12, %c0_13] : memref<1x128xf32, #tpu.memory_space<vmem>>, vector<1x128xf32>
      tpu.vector_store %arg6[%c0_12, %c0_13], %18 {strides = array<i32>} : memref<1x128xf32, #tpu.memory_space<vmem>>, vector<1x128xf32>,
    } else {
    }
    %c0 = arith.constant 0 : index
    %c0_1 = arith.constant 0 : index
    %3 = vector.load %arg2[%c0, %c0_1] : memref<7x128xf32, #tpu.memory_space<vmem>>, vector<7x128xf32>
    %c0_2 = arith.constant 0 : index
    %c0_3 = arith.constant 0 : index
    %4 = vector.load %arg3[%c0_2, %c0_3] : memref<7x128xf32, #tpu.memory_space<vmem>>, vector<7x128xf32>
    %c1_i32 = arith.constant 1 : i32
    %5 = arith.muli %arg0, %c1_i32 : i32
    %6 = arith.addi %5, %arg1 : i32
    %c0_i32_4 = arith.constant 0 : i32
    %7 = arith.cmpi sge, %6, %c0_i32_4 : i32
    %true = arith.constant true
    %8 = arith.xori %7, %true : i1
    %9 = arith.extui %8 : i1 to i32
    %c0_i32_5 = arith.constant 0 : i32
    %10 = arith.cmpi ne, %9, %c0_i32_5 : i32
    scf.if %10 {
      %16 = vector.extract_strided_slice %3 {offsets = [0, 0], sizes = [3, 128], strides = [1, 1]} : vector<7x128xf32> to vector<3x128xf32>
      %17 = vector.extract_strided_slice %4 {offsets = [0, 0], sizes = [3, 128], strides = [1, 1]} : vector<7x128xf32> to vector<3x128xf32>
      %18 = arith.subf %16, %17 : vector<3x128xf32>
      %19 = arith.mulf %18, %18 : vector<3x128xf32>
      %20 = vector.extract_strided_slice %3 {offsets = [3, 0], sizes = [4, 128], strides = [1, 1]} : vector<7x128xf32> to vector<4x128xf32>
      %21 = vector.extract_strided_slice %4 {offsets = [3, 0], sizes = [4, 128], strides = [1, 1]} : vector<7x128xf32> to vector<4x128xf32>
      %22 = arith.mulf %20, %21 : vector<4x128xf32>
      %cst = arith.constant dense<0.000000e+00> : vector<128xf32>
      %23 = vector.multi_reduction <add>, %22, %cst [0] : vector<4x128xf32> to vector<128xf32>
      %24 = vector.shape_cast %23 : vector<128xf32> to vector<1x128xf32>
      %25 = arith.mulf %20, %20 : vector<4x128xf32>
      %cst_9 = arith.constant dense<0.000000e+00> : vector<128xf32>
      %26 = vector.multi_reduction <add>, %25, %cst_9 [0] : vector<4x128xf32> to vector<128xf32>
      %27 = vector.shape_cast %26 : vector<128xf32> to vector<1x128xf32>
      %28 = arith.mulf %21, %21 : vector<4x128xf32>
      %cst_10 = arith.constant dense<0.000000e+00> : vector<128xf32>
      %29 = vector.multi_reduction <add>, %28, %cst_10 [0] : vector<4x128xf32> to vector<128xf32>
      %30 = vector.shape_cast %29 : vector<128xf32> to vector<1x128xf32>
      %31 = math.absf %24 : vector<1x128xf32>
      %32 = arith.mulf %27, %30 : vector<1x128xf32>
      %cst_11 = arith.constant 1.000000e-30 : f32
      %33 = vector.broadcast %cst_11 : f32 to vector<1x128xf32>
      %34 = arith.maximumf %32, %33 : vector<1x128xf32>
      %35 = math.rsqrt %34 : vector<1x128xf32>
      %36 = arith.mulf %31, %35 : vector<1x128xf32>
      %cst_12 = arith.constant 1.000000e+00 : f32
      %37 = vector.broadcast %cst_12 : f32 to vector<1x128xf32>
      %38 = arith.minimumf %36, %37 : vector<1x128xf32>
      %39 = arith.mulf %38, %38 : vector<1x128xf32>
      %cst_13 = arith.constant 1.000000e+00 : f32
      %40 = vector.broadcast %cst_13 : f32 to vector<1x128xf32>
      %41 = arith.subf %40, %39 : vector<1x128xf32>
      %cst_14 = arith.constant 0.000000e+00 : f32
      %42 = vector.broadcast %cst_14 : f32 to vector<1x128xf32>
      %43 = arith.maximumf %41, %42 : vector<1x128xf32>
      %44 = math.sqrt %43 : vector<1x128xf32>
      %45 = math.atan2 %44, %38 : vector<1x128xf32>
      %cst_15 = arith.constant 2.000000e+00 : f32
      %46 = vector.broadcast %cst_15 : f32 to vector<1x128xf32>
      %47 = arith.mulf %46, %45 : vector<1x128xf32>
      %48 = arith.mulf %47, %47 : vector<1x128xf32>
      %c0_16 = arith.constant 0 : index
      %c0_17 = arith.constant 0 : index
      %49 = vector.load %arg5[%c0_16, %c0_17] : memref<8x128xf32, #tpu.memory_space<vmem>>, vector<3x128xf32>
      %50 = arith.addf %49, %19 : vector<3x128xf32>
      %c0_18 = arith.constant 0 : index
      %c0_19 = arith.constant 0 : index
      %51 = vector.load %arg5[%c0_18, %c0_19] : memref<8x128xf32, #tpu.memory_space<vmem>>, vector<3x128xf32>
      tpu.vector_store %arg5[%c0_18, %c0_19], %50 {strides = array<i32>} : memref<8x128xf32, #tpu.memory_space<vmem>>, vector<3x128xf32>,
      %c0_20 = arith.constant 0 : index
      %c0_21 = arith.constant 0 : index
      %52 = vector.load %arg6[%c0_20, %c0_21] : memref<1x128xf32, #tpu.memory_space<vmem>>, vector<1x128xf32>
      %53 = arith.addf %52, %48 : vector<1x128xf32>
      %c0_22 = arith.constant 0 : index
      %c0_23 = arith.constant 0 : index
      %54 = vector.load %arg6[%c0_22, %c0_23] : memref<1x128xf32, #tpu.memory_space<vmem>>, vector<1x128xf32>
      tpu.vector_store %arg6[%c0_22, %c0_23], %53 {strides = array<i32>} : memref<1x128xf32, #tpu.memory_space<vmem>>, vector<1x128xf32>,
    } else {
    }
    %11 = arith.extui %7 : i1 to i32
    %c0_i32_6 = arith.constant 0 : i32
    %12 = arith.cmpi ne, %11, %c0_i32_6 : i32
    scf.if %12 {
      %16 = tpu.iota {dimensions = array<i32: 1>} : vector<1x128xi32>
      %c128_i32 = arith.constant 128 : i32
      %17 = arith.muli %6, %c128_i32 : i32
      %18 = vector.broadcast %17 : i32 to vector<1x128xi32>
      %19 = arith.addi %18, %16 : vector<1x128xi32>
      %c8_i32 = arith.constant 8 : i32
      %20 = vector.broadcast %c8_i32 : i32 to vector<1x128xi32>
      %21 = arith.cmpi slt, %19, %20 : vector<1x128xi32>
      %22 = vector.extract_strided_slice %3 {offsets = [0, 0], sizes = [3, 128], strides = [1, 1]} : vector<7x128xf32> to vector<3x128xf32>
      %23 = vector.extract_strided_slice %4 {offsets = [0, 0], sizes = [3, 128], strides = [1, 1]} : vector<7x128xf32> to vector<3x128xf32>
      %24 = arith.subf %22, %23 : vector<3x128xf32>
      %25 = arith.mulf %24, %24 : vector<3x128xf32>
      %26 = vector.extract_strided_slice %3 {offsets = [3, 0], sizes = [4, 128], strides = [1, 1]} : vector<7x128xf32> to vector<4x128xf32>
      %27 = vector.extract_strided_slice %4 {offsets = [3, 0], sizes = [4, 128], strides = [1, 1]} : vector<7x128xf32> to vector<4x128xf32>
      %28 = arith.mulf %26, %27 : vector<4x128xf32>
      %cst = arith.constant dense<0.000000e+00> : vector<128xf32>
      %29 = vector.multi_reduction <add>, %28, %cst [0] : vector<4x128xf32> to vector<128xf32>
      %30 = vector.shape_cast %29 : vector<128xf32> to vector<1x128xf32>
      %31 = arith.mulf %26, %26 : vector<4x128xf32>
      %cst_9 = arith.constant dense<0.000000e+00> : vector<128xf32>
      %32 = vector.multi_reduction <add>, %31, %cst_9 [0] : vector<4x128xf32> to vector<128xf32>
      %33 = vector.shape_cast %32 : vector<128xf32> to vector<1x128xf32>
      %34 = arith.mulf %27, %27 : vector<4x128xf32>
      %cst_10 = arith.constant dense<0.000000e+00> : vector<128xf32>
      %35 = vector.multi_reduction <add>, %34, %cst_10 [0] : vector<4x128xf32> to vector<128xf32>
      %36 = vector.shape_cast %35 : vector<128xf32> to vector<1x128xf32>
      %37 = math.absf %30 : vector<1x128xf32>
      %38 = arith.mulf %33, %36 : vector<1x128xf32>
      %cst_11 = arith.constant 1.000000e-30 : f32
      %39 = vector.broadcast %cst_11 : f32 to vector<1x128xf32>
      %40 = arith.maximumf %38, %39 : vector<1x128xf32>
      %41 = math.rsqrt %40 : vector<1x128xf32>
      %42 = arith.mulf %37, %41 : vector<1x128xf32>
      %cst_12 = arith.constant 1.000000e+00 : f32
      %43 = vector.broadcast %cst_12 : f32 to vector<1x128xf32>
      %44 = arith.minimumf %42, %43 : vector<1x128xf32>
      %45 = arith.mulf %44, %44 : vector<1x128xf32>
      %cst_13 = arith.constant 1.000000e+00 : f32
      %46 = vector.broadcast %cst_13 : f32 to vector<1x128xf32>
      %47 = arith.subf %46, %45 : vector<1x128xf32>
      %cst_14 = arith.constant 0.000000e+00 : f32
      %48 = vector.broadcast %cst_14 : f32 to vector<1x128xf32>
      %49 = arith.maximumf %47, %48 : vector<1x128xf32>
      %50 = math.sqrt %49 : vector<1x128xf32>
      %51 = math.atan2 %50, %44 : vector<1x128xf32>
      %cst_15 = arith.constant 2.000000e+00 : f32
      %52 = vector.broadcast %cst_15 : f32 to vector<1x128xf32>
      %53 = arith.mulf %52, %51 : vector<1x128xf32>
      %54 = arith.mulf %53, %53 : vector<1x128xf32>
      %cst_16 = arith.constant 0.000000e+00 : f32
      %55 = vector.shape_cast %21 : vector<1x128xi1> to vector<1x128xi1>
      %56 = vector.broadcast %55 : vector<1x128xi1> to vector<3x128xi1>
      %57 = vector.broadcast %cst_16 : f32 to vector<3x128xf32>
      %58 = arith.select %56, %25, %57 : vector<3x128xi1>, vector<3x128xf32>
      %cst_17 = arith.constant 0.000000e+00 : f32
      %59 = vector.broadcast %cst_17 : f32 to vector<1x128xf32>
      %60 = arith.select %21, %54, %59 : vector<1x128xi1>, vector<1x128xf32>
      %c0_18 = arith.constant 0 : index
      %c0_19 = arith.constant 0 : index
      %61 = vector.load %arg5[%c0_18, %c0_19] : memref<8x128xf32, #tpu.memory_space<vmem>>, vector<3x128xf32>
      %62 = arith.addf %61, %58 : vector<3x128xf32>
      %c0_20 = arith.constant 0 : index
      %c0_21 = arith.constant 0 : index
      %63 = vector.load %arg5[%c0_20, %c0_21] : memref<8x128xf32, #tpu.memory_space<vmem>>, vector<3x128xf32>
      tpu.vector_store %arg5[%c0_20, %c0_21], %62 {strides = array<i32>} : memref<8x128xf32, #tpu.memory_space<vmem>>, vector<3x128xf32>,
      %c0_22 = arith.constant 0 : index
      %c0_23 = arith.constant 0 : index
      %64 = vector.load %arg6[%c0_22, %c0_23] : memref<1x128xf32, #tpu.memory_space<vmem>>, vector<1x128xf32>
      %65 = arith.addf %64, %60 : vector<1x128xf32>
      %c0_24 = arith.constant 0 : index
      %c0_25 = arith.constant 0 : index
      %66 = vector.load %arg6[%c0_24, %c0_25] : memref<1x128xf32, #tpu.memory_space<vmem>>, vector<1x128xf32>
      tpu.vector_store %arg6[%c0_24, %c0_25], %65 {strides = array<i32>} : memref<1x128xf32, #tpu.memory_space<vmem>>, vector<1x128xf32>,
    } else {
    }
    %c0_i32_7 = arith.constant 0 : i32
    %13 = arith.cmpi eq, %arg1, %c0_i32_7 : i32
    %14 = arith.extui %13 : i1 to i32
    %c0_i32_8 = arith.constant 0 : i32
    %15 = arith.cmpi ne, %14, %c0_i32_8 : i32
    scf.if %15 {
      %c0_9 = arith.constant 0 : index
      %c0_10 = arith.constant 0 : index
      %16 = vector.load %arg5[%c0_9, %c0_10] : memref<8x128xf32, #tpu.memory_space<vmem>>, vector<8x128xf32>
      %17 = vector.shape_cast %16 : vector<8x128xf32> to vector<1x8x128xf32>
      %cst = arith.constant dense<0.000000e+00> : vector<1xf32>
      %18 = vector.multi_reduction <add>, %17, %cst [1, 2] : vector<1x8x128xf32> to vector<1xf32>
      %19 = vector.shape_cast %18 : vector<1xf32> to vector<1x1x1xf32>
      %20 = vector.extract %19[0, 0, 0] : f32 from vector<1x1x1xf32>
      %c0_11 = arith.constant 0 : index
      %c0_12 = arith.constant 0 : index
      %21 = memref.load %arg4[%c0_11, %c0_12] : memref<1x2xf32, #tpu.memory_space<smem>>
      memref.store %20, %arg4[%c0_11, %c0_12] : memref<1x2xf32, #tpu.memory_space<smem>>
      %c0_13 = arith.constant 0 : index
      %c0_14 = arith.constant 0 : index
      %22 = vector.load %arg6[%c0_13, %c0_14] : memref<1x128xf32, #tpu.memory_space<vmem>>, vector<1x128xf32>
      %23 = vector.shape_cast %22 : vector<1x128xf32> to vector<1x1x128xf32>
      %cst_15 = arith.constant dense<0.000000e+00> : vector<1xf32>
      %24 = vector.multi_reduction <add>, %23, %cst_15 [1, 2] : vector<1x1x128xf32> to vector<1xf32>
      %25 = vector.shape_cast %24 : vector<1xf32> to vector<1x1x1xf32>
      %26 = vector.extract %25[0, 0, 0] : f32 from vector<1x1x1xf32>
      %c0_16 = arith.constant 0 : index
      %c1 = arith.constant 1 : index
      %27 = memref.load %arg4[%c0_16, %c1] : memref<1x2xf32, #tpu.memory_space<smem>>
      memref.store %26, %arg4[%c0_16, %c1] : memref<1x2xf32, #tpu.memory_space<smem>>
    } else {
    }
    return
  }
  func.func @transform_0(%arg0: i32, %arg1: i32) -> (i32, i32) {
    %c1_i32 = arith.constant 1 : i32
    %0 = arith.muli %arg0, %c1_i32 : i32
    %1 = arith.addi %0, %arg1 : i32
    %c0_i32 = arith.constant 0 : i32
    %c0_i32_0 = arith.constant 0 : i32
    return %c0_i32, %1 : i32, i32
  }
  func.func @transform_1(%arg0: i32, %arg1: i32) -> (i32, i32) {
    %c1_i32 = arith.constant 1 : i32
    %0 = arith.muli %arg0, %c1_i32 : i32
    %1 = arith.addi %0, %arg1 : i32
    %c0_i32 = arith.constant 0 : i32
    %c0_i32_0 = arith.constant 0 : i32
    return %c0_i32, %1 : i32, i32
  }
  func.func @transform_2(%arg0: i32, %arg1: i32) -> (i32, i32) {
    %c0_i32 = arith.constant 0 : i32
    %c0_i32_0 = arith.constant 0 : i32
    return %arg0, %c0_i32 : i32, i32
  }
}

</mosaic_0001>

<llo_original>
// kernel: translation_rotation_loss.1
$region0: #{translation_rotation_loss.1}
  #allocation0 [shape = 'u32[]', space=smem, size = 0x4, offset = 0x4, fixed_abs, tag = 'smem constant byte address 0x4 - core index']
  #allocation1 [shape = 'u32[72,128]{1,0:T(1,128)}', space=vmem, size = 0x9000, scoped, tag = 'internal scratch']
  #allocation2 [shape = 'f32[8,128]{1,0:T(8,128)}', space=vmem, size = 0x1000, scoped, tag = 'scratch operand']
  #allocation3 [shape = 'f32[1,128]{1,0:T(1,128)}', space=vmem, size = 0x200, scoped, tag = 'scratch operand']
  %s0 = inlined_call_operand.vmem [shape: f32[7,128], index: 0, kind: input, shape index: {}]
  %s1 = inlined_call_operand.vmem [shape: f32[7,128], index: 1, kind: input, shape index: {}]
  %s2 = inlined_call_operand.vmem [shape: f32[1,2], index: 2, kind: output, shape index: {}]
  %s3 = sld [smem:[#allocation0]]
  $region34: #{translation_rotation_loss.1} parent=0
    _
  %s5 = ssub.s32 1, %s3
  %s6 = scalar_select 0, %s5, %s3
  $region1: #{translation_rotation_loss.1} parent=0
    #allocation4 [shape = 'u8[512]{0}', space=smem, size = 0x200, scoped, tag = 'output window, operand 0, single buffered']
    #allocation5 [shape = 's32[1]{0}', space=sflag, size = 0x4, scoped, tag = 'scoped memory for translation_rotation_loss.1']
    %7 = vsyncpa [#allocation5], 0
    // Predicated region
    $region2: #{translation_rotation_loss.1} parent=1 // pred_check
      _
    $region3: #{translation_rotation_loss.1} parent=1 // pred_check_branch
      %9 = sbr.rel (0) target = $region5
    $region4: #{translation_rotation_loss.1} parent=1 // pred_region
      %s10 = sadd.s32 0, 0
      %p11 = scmp.lt.s32.totalorder %s10, 0
      %s12 = scalar_select %p11, %s10, 0
      %s13 = smul.addr %s12, 8
      %s14 = scalar_lea.vmem %s0, %s13
      %s15 = sadd.s32 0, 0
    $region5: #{translation_rotation_loss.1} parent=1 // pred_fallthru
      _
    // Predicated region
    $region6: #{translation_rotation_loss.1} parent=1 // pred_check
      _
    $region7: #{translation_rotation_loss.1} parent=1 // pred_check_branch
      %17 = sbr.rel (0) target = $region9
    $region8: #{translation_rotation_loss.1} parent=1 // pred_region
      %s18 = sadd.s32 0, 0
      %p19 = scmp.lt.s32.totalorder %s18, 0
      %s20 = scalar_select %p19, %s18, 0
      %s21 = smul.addr %s20, 8
      %s22 = scalar_lea.vmem %s1, %s21
      %s23 = sadd.s32 0, 0
    $region9: #{translation_rotation_loss.1} parent=1 // pred_fallthru
      _
    %s24 = sadd.s32 0, 0
    %p25 = scmp.lt.s32.totalorder %s24, 0
    %s26 = scalar_select %p25, %s24, 0
    %s27 = smul.addr %s26, 8
    %s28 = scalar_lea.vmem %s0, %s27
    %s29 = sadd.s32 0, 0
    %p30 = scmp.lt.s32.totalorder %s29, 0
    %s31 = scalar_select %p30, %s29, 0
    %s32 = smul.addr %s31, 8
    %s33 = scalar_lea.vmem %s1, %s32
    %s34 = sadd.s32 0, 0
    %p35 = scmp.lt.s32.totalorder %s34, 0
    %s36 = scalar_select %p35, %s34, 0
    %s37 = smul.addr %s36, 8
    %s38 = scalar_lea.vmem %s0, %s37
    %s39 = sadd.s32 0, 0
    %s40 = sadd.s32 0, 0
    %p41 = scmp.lt.s32.totalorder %s40, 0
    %s42 = scalar_select %p41, %s40, 0
    %s43 = smul.addr %s42, 8
    %s44 = scalar_lea.vmem %s1, %s43
    %s45 = sadd.s32 0, 0
    %p46 = scmp.eq.s32.totalorder 0, 0
    // Predicated region
    $region10: #{translation_rotation_loss.1} parent=1 // pred_check
      %p47 = pneg %p46
    $region11: #{translation_rotation_loss.1} parent=1 // pred_check_branch
      %49 = sbr.rel (%p47) target = $region13
    $region12: #{translation_rotation_loss.1} parent=1 // pred_region
      %50 = vst [vmem:[#allocation2] sm:$0xff] 0.0
      %51 = vst [vmem:[#allocation3] sm:$0x1] 0.0
    $region13: #{translation_rotation_loss.1} parent=1 // pred_fallthru
      _
    %v52 = vld [vmem:[%s38] sm:$0x7f]
    %v53 = vld [vmem:[%s44] sm:$0x7f]
    %s54 = sadd.s32 0, 0
    %p55 = scmp.ge.s32.totalorder %s54, 0
    %p56 = scmp.lt.s32.totalorder %s54, 0
    // Predicated region
    $region14: #{translation_rotation_loss.1} parent=1 // pred_check
      %p57 = pneg %p56
    $region15: #{translation_rotation_loss.1} parent=1 // pred_check_branch
      %59 = sbr.rel (%p57) target = $region17
    $region16: #{translation_rotation_loss.1} parent=1 // pred_region
      %v60 = vsub.f32 %v52, %v53
      %v61 = vmul.f32 %v60, %v60
      %v62 = vmul.f32 %v52, %v53
      %v64 = vrot.slane %v62, 3
      %vm66 = vcmask 1043456
      %v67 = vsel %vm66, %v64, 0.0
      %v68 = vrot.slane %v67, 4
      %v69 = vadd.f32 %v67, %v68
      %v70 = vrot.slane %v69, 2
      %v71 = vadd.f32 %v69, %v70
      %v72 = vrot.slane %v71, 1
      %v73 = vadd.f32 %v71, %v72
      %v74 = vmul.f32 %v52, %v52
      %v76 = vrot.slane %v74, 3
      %v78 = vsel %vm66, %v76, 0.0
      %v79 = vrot.slane %v78, 4
      %v80 = vadd.f32 %v78, %v79
      %v81 = vrot.slane %v80, 2
      %v82 = vadd.f32 %v80, %v81
      %v83 = vrot.slane %v82, 1
      %v84 = vadd.f32 %v82, %v83
      %v85 = vmul.f32 %v53, %v53
      %v87 = vrot.slane %v85, 3
      %v89 = vsel %vm66, %v87, 0.0
      %v90 = vrot.slane %v89, 4
      %v91 = vadd.f32 %v89, %v90
      %v92 = vrot.slane %v91, 2
      %v93 = vadd.f32 %v91, %v92
      %v94 = vrot.slane %v93, 1
      %v95 = vadd.f32 %v93, %v94
      %v96 = vand.u32 2147483647, %v73
      %v97 = vmul.f32 %v84, %v95
      %v98 = vmax.f32 %v97, 1e-30
      %v99 = vrsqrt.pop %v98
      %v100 = vmul.f32 %v99, %v98
      %v101 = vmul.f32 %v100, %v99
      %v102 = vmul.f32 0.5, %v101
      %v103 = vsub.f32 1.5, %v102
      %v104 = vmul.f32 %v99, %v103
      %vm105 = vweird.f32 %v98
      %vm106 = vweird.f32 %v99
      %vm107 = vmor %vm105, %vm106
      %v108 = vsel %vm107, %v99, %v104
      %v109 = vmul.f32 %v96, %v108
      %v110 = vmin.f32 %v109, 1.0
      %v111 = vmul.f32 %v110, %v110
      %v112 = vsub.f32 1.0, %v111
      %v113 = vmax.f32 %v112, 0.0
      %v114 = vrsqrt.pop %v113
      %v115 = vmul.f32 %v114, %v113
      %v116 = vmul.f32 %v115, %v114
      %v117 = vmul.f32 0.5, %v116
      %v118 = vsub.f32 1.5, %v117
      %v119 = vmul.f32 %v114, %v118
      %v120 = vmul.f32 %v113, %v119
      %vm121 = vcmp.eq.f32.partialorder %v113, inf
      %v122 = vsel %vm121, %v113, %v120
      %vm123 = vcmp.eq.f32.partialorder %v113, 0.0
      %v124 = vand.u32 %v113, 2147483648
      %v125 = vsel %vm123, %v124, %v122
      %v126 = vand.u32 2147483647, %v110
      %v127 = vand.u32 2147483647, %v125
      %v128 = vmin.f32 %v126, %v127
      %v129 = vmax.f32 %v126, %v127
      %v130 = vrcp.pop %v129
      %v131 = vmul.f32 %v129, %v130
      %v132 = vsub.f32 1.0, %v131
      %v133 = vmul.f32 %v130, %v132
      %v134 = vadd.f32 %v130, %v133
      %vm135 = vweird.f32 %v129
      %vm136 = vweird.f32 %v130
      %vm137 = vmor %vm135, %vm136
      %v138 = vsel %vm137, %v130, %v134
      %v139 = vand.u32 2147483647, %v129
      %vm140 = vcmp.eq.f32.partialorder %v139, 8.507059e+37
      %v141 = vand.u32 %v129, 2147483648
      %v142 = vor.u32 1.1754944e-38, %v141
      %v143 = vsel %vm140, %v142, %v138
      %v144 = vmul.f32 %v128, %v143
      %v145 = vmul.f32 %v144, %v144
      %v146 = vmul.f32 0.002785687, %v145
      %v147 = vadd.f32 %v146, -0.015866
      %v148 = vmul.f32 %v147, %v145
      %v149 = vadd.f32 %v148, 0.04247222
      %v150 = vmul.f32 %v149, %v145
      %v151 = vadd.f32 %v150, -0.074975304
      %v152 = vmul.f32 %v151, %v145
      %v153 = vadd.f32 %v152, 0.1064488
      %v154 = vmul.f32 %v153, %v145
      %v155 = vadd.f32 %v154, -0.14207031
      %v156 = vmul.f32 %v155, %v145
      %v157 = vadd.f32 %v156, 0.19993454
      %v158 = vmul.f32 %v157, %v145
      %v159 = vadd.f32 %v158, -0.33333147
      %v160 = vmul.f32 %v159, %v145
      %v161 = vmul.f32 %v160, %v144
      %v162 = vadd.f32 %v161, %v144
      %vm163 = vcmp.gt.f32.partialorder %v127, %v126
      %v164 = vsub.f32 1.5707964, %v162
      %v165 = vsel %vm163, %v164, %v162
      %vm166 = vcmp.lt.f32.partialorder %v110, 0.0
      %v167 = vsub.f32 3.1415927, %v165
      %v168 = vsel %vm166, %v167, %v165
      %vm169 = vcmp.lt.s32.totalorder %v110, 0
      %v170 = vsel %vm169, 3.1415927, 0.0
      %vm171 = vcmp.eq.f32.partialorder %v125, 0.0
      %v172 = vsel %vm171, %v170, %v168
      %vm173 = vcmp.ne.f32.partialorder %v110, %v110
      %vm174 = vcmp.ne.f32.partialorder %v125, %v125
      %vm175 = vmor %vm173, %vm174
      %v176 = vsel %vm175, nan, %v172
      %vm177 = vcmp.lt.f32.partialorder %v110, 0.0
      %v178 = vsel %vm177, 2.3561945, 0.7853982
      %vm179 = vcmp.eq.s32.totalorder %v126, inf
      %vm180 = vcmp.eq.s32.totalorder %v127, inf
      %vm181 = vmand %vm179, %vm180
      %v182 = vsel %vm181, %v178, %v176
      %v183 = vand.u32 2147483647, %v182
      %v184 = vand.u32 %v125, 2147483648
      %v185 = vor.u32 %v183, %v184
      %v186 = vmul.f32 %v185, 2.0
      %v187 = vmul.f32 %v186, %v186
      %v188 = vld [vmem:[#allocation2] sm:$0x7]
      %v189 = vadd.f32 %v188, %v61
      %190 = vst [vmem:[#allocation2] sm:$0x7] %v189
      %v191 = vld [vmem:[#allocation3] sm:$0x1]
      %v192 = vadd.f32 %v191, %v187
      %193 = vst [vmem:[#allocation3] sm:$0x1] %v192
    $region17: #{translation_rotation_loss.1} parent=1 // pred_fallthru
      _
    // Predicated region
    $region18: #{translation_rotation_loss.1} parent=1 // pred_check
      %p194 = pneg %p55
    $region19: #{translation_rotation_loss.1} parent=1 // pred_check_branch
      %196 = sbr.rel (%p194) target = $region21
    $region20: #{translation_rotation_loss.1} parent=1 // pred_region
      %v197 = vlaneseq
      %v198 = vand.u32 %v197, 127
      %s199 = smul.u32 %s54, 128
      %v200 = vstv %s199
      %v201 = vadd.s32 %v200, %v198
      %vm202 = vcmp.lt.s32.totalorder %v201, 8
      %v203 = vsub.f32 %v52, %v53
      %v204 = vmul.f32 %v203, %v203
      %v205 = vmul.f32 %v52, %v53
      %v207 = vrot.slane %v205, 3
      %vm209 = vcmask 1043456
      %v210 = vsel %vm209, %v207, 0.0
      %v211 = vrot.slane %v210, 4
      %v212 = vadd.f32 %v210, %v211
      %v213 = vrot.slane %v212, 2
      %v214 = vadd.f32 %v212, %v213
      %v215 = vrot.slane %v214, 1
      %v216 = vadd.f32 %v214, %v215
      %v217 = vmul.f32 %v52, %v52
      %v219 = vrot.slane %v217, 3
      %v221 = vsel %vm209, %v219, 0.0
      %v222 = vrot.slane %v221, 4
      %v223 = vadd.f32 %v221, %v222
      %v224 = vrot.slane %v223, 2
      %v225 = vadd.f32 %v223, %v224
      %v226 = vrot.slane %v225, 1
      %v227 = vadd.f32 %v225, %v226
      %v228 = vmul.f32 %v53, %v53
      %v230 = vrot.slane %v228, 3
      %v232 = vsel %vm209, %v230, 0.0
      %v233 = vrot.slane %v232, 4
      %v234 = vadd.f32 %v232, %v233
      %v235 = vrot.slane %v234, 2
      %v236 = vadd.f32 %v234, %v235
      %v237 = vrot.slane %v236, 1
      %v238 = vadd.f32 %v236, %v237
      %v239 = vand.u32 2147483647, %v216
      %v240 = vmul.f32 %v227, %v238
      %v241 = vmax.f32 %v240, 1e-30
      %v242 = vrsqrt.pop %v241
      %v243 = vmul.f32 %v242, %v241
      %v244 = vmul.f32 %v243, %v242
      %v245 = vmul.f32 0.5, %v244
      %v246 = vsub.f32 1.5, %v245
      %v247 = vmul.f32 %v242, %v246
      %vm248 = vweird.f32 %v241
      %vm249 = vweird.f32 %v242
      %vm250 = vmor %vm248, %vm249
      %v251 = vsel %vm250, %v242, %v247
      %v252 = vmul.f32 %v239, %v251
      %v253 = vmin.f32 %v252, 1.0
      %v254 = vmul.f32 %v253, %v253
      %v255 = vsub.f32 1.0, %v254
      %v256 = vmax.f32 %v255, 0.0
      %v257 = vrsqrt.pop %v256
      %v258 = vmul.f32 %v257, %v256
      %v259 = vmul.f32 %v258, %v257
      %v260 = vmul.f32 0.5, %v259
      %v261 = vsub.f32 1.5, %v260
      %v262 = vmul.f32 %v257, %v261
      %v263 = vmul.f32 %v256, %v262
      %vm264 = vcmp.eq.f32.partialorder %v256, inf
      %v265 = vsel %vm264, %v256, %v263
      %vm266 = vcmp.eq.f32.partialorder %v256, 0.0
      %v267 = vand.u32 %v256, 2147483648
      %v268 = vsel %vm266, %v267, %v265
      %v269 = vand.u32 2147483647, %v253
      %v270 = vand.u32 2147483647, %v268
      %v271 = vmin.f32 %v269, %v270
      %v272 = vmax.f32 %v269, %v270
      %v273 = vrcp.pop %v272
      %v274 = vmul.f32 %v272, %v273
      %v275 = vsub.f32 1.0, %v274
      %v276 = vmul.f32 %v273, %v275
      %v277 = vadd.f32 %v273, %v276
      %vm278 = vweird.f32 %v272
      %vm279 = vweird.f32 %v273
      %vm280 = vmor %vm278, %vm279
      %v281 = vsel %vm280, %v273, %v277
      %v282 = vand.u32 2147483647, %v272
      %vm283 = vcmp.eq.f32.partialorder %v282, 8.507059e+37
      %v284 = vand.u32 %v272, 2147483648
      %v285 = vor.u32 1.1754944e-38, %v284
      %v286 = vsel %vm283, %v285, %v281
      %v287 = vmul.f32 %v271, %v286
      %v288 = vmul.f32 %v287, %v287
      %v289 = vmul.f32 0.002785687, %v288
      %v290 = vadd.f32 %v289, -0.015866
      %v291 = vmul.f32 %v290, %v288
      %v292 = vadd.f32 %v291, 0.04247222
      %v293 = vmul.f32 %v292, %v288
      %v294 = vadd.f32 %v293, -0.074975304
      %v295 = vmul.f32 %v294, %v288
      %v296 = vadd.f32 %v295, 0.1064488
      %v297 = vmul.f32 %v296, %v288
      %v298 = vadd.f32 %v297, -0.14207031
      %v299 = vmul.f32 %v298, %v288
      %v300 = vadd.f32 %v299, 0.19993454
      %v301 = vmul.f32 %v300, %v288
      %v302 = vadd.f32 %v301, -0.33333147
      %v303 = vmul.f32 %v302, %v288
      %v304 = vmul.f32 %v303, %v287
      %v305 = vadd.f32 %v304, %v287
      %vm306 = vcmp.gt.f32.partialorder %v270, %v269
      %v307 = vsub.f32 1.5707964, %v305
      %v308 = vsel %vm306, %v307, %v305
      %vm309 = vcmp.lt.f32.partialorder %v253, 0.0
      %v310 = vsub.f32 3.1415927, %v308
      %v311 = vsel %vm309, %v310, %v308
      %vm312 = vcmp.lt.s32.totalorder %v253, 0
      %v313 = vsel %vm312, 3.1415927, 0.0
      %vm314 = vcmp.eq.f32.partialorder %v268, 0.0
      %v315 = vsel %vm314, %v313, %v311
      %vm316 = vcmp.ne.f32.partialorder %v253, %v253
      %vm317 = vcmp.ne.f32.partialorder %v268, %v268
      %vm318 = vmor %vm316, %vm317
      %v319 = vsel %vm318, nan, %v315
      %vm320 = vcmp.lt.f32.partialorder %v253, 0.0
      %v321 = vsel %vm320, 2.3561945, 0.7853982
      %vm322 = vcmp.eq.s32.totalorder %v269, inf
      %vm323 = vcmp.eq.s32.totalorder %v270, inf
      %vm324 = vmand %vm322, %vm323
      %v325 = vsel %vm324, %v321, %v319
      %v326 = vand.u32 2147483647, %v325
      %v327 = vand.u32 %v268, 2147483648
      %v328 = vor.u32 %v326, %v327
      %v329 = vmul.f32 %v328, 2.0
      %v330 = vmul.f32 %v329, %v329
      %v331 = vsel %vm202, 1, 0
      %vm332 = vcmp.eq.s32.totalorder %v331, 1
      %v333 = vsel %vm332, %v204, 0.0
      %v334 = vsel %vm202, %v330, 0.0
      %v335 = vld [vmem:[#allocation2] sm:$0x7]
      %v336 = vadd.f32 %v335, %v333
      %337 = vst [vmem:[#allocation2] sm:$0x7] %v336
      %v338 = vld [vmem:[#allocation3] sm:$0x1]
      %v339 = vadd.f32 %v338, %v334
      %340 = vst [vmem:[#allocation3] sm:$0x1] %v339
    $region21: #{translation_rotation_loss.1} parent=1 // pred_fallthru
      _
    // Predicated region
    $region22: #{translation_rotation_loss.1} parent=1 // pred_check
      %p341 = pneg %p46
    $region23: #{translation_rotation_loss.1} parent=1 // pred_check_branch
      %343 = sbr.rel (%p341) target = $region25
    $region24: #{translation_rotation_loss.1} parent=1 // pred_region
      %v344 = vld [vmem:[#allocation2] sm:$0xff]
      %345 = vadd.xlane.f32.xlu0 %v344
      %v346 = vpop.xlane.xlu0 %345
      %v347 = vrot.slane %v346, 4
      %v348 = vadd.f32 %v346, %v347
      %v349 = vrot.slane %v348, 2
      %v350 = vadd.f32 %v348, %v349
      %v351 = vrot.slane %v350, 1
      %v352 = vadd.f32 %v350, %v351
      %s353 = vtos %v352
      %s354 = scalar_lea.smem [#allocation4], 0
      %355 = sst [smem:[%s354]] %s353
      %v356 = vld [vmem:[#allocation3] sm:$0x1]
      %vm357 = vcmask 1040384
      %v358 = vsel %vm357, %v356, 0.0
      %359 = vadd.xlane.f32.xlu0 %v358
      %v360 = vpop.xlane.xlu0 %359
      %v361 = vrot.slane %v360, 4
      %v362 = vadd.f32 %v360, %v361
      %v363 = vrot.slane %v362, 2
      %v364 = vadd.f32 %v362, %v363
      %v365 = vrot.slane %v364, 1
      %v366 = vadd.f32 %v364, %v365
      %s367 = vtos %v366
      %s368 = scalar_lea.smem [#allocation4], 1
      %369 = sst [smem:[%s368]] %s367
    $region25: #{translation_rotation_loss.1} parent=1 // pred_fallthru
      _
    // Predicated region
    $region26: #{translation_rotation_loss.1} parent=1 // pred_check
      _
    $region27: #{translation_rotation_loss.1} parent=1 // pred_check_branch
      %371 = sbr.rel (0) target = $region29
    $region28: #{translation_rotation_loss.1} parent=1 // pred_region
      %373 = vsyncadd [#allocation5], 0
      %s375 = sshll.u32 %s2, 4
      %s376 = int_to_ptr.vmem [resolvable:$true] %s375
      %378 = dma.smem_to_vmem [#allocation4], 16, %s376, [#allocation5]
    $region29: #{translation_rotation_loss.1} parent=1 // pred_fallthru
      _
    // Predicated region
    $region30: #{translation_rotation_loss.1} parent=1 // pred_check
      _
    $region31: #{translation_rotation_loss.1} parent=1 // pred_check_branch
      %380 = sbr.rel (0) target = $region33
    $region32: #{translation_rotation_loss.1} parent=1 // pred_region
      %382 = dma.done [#allocation5], 16
    $region33: #{translation_rotation_loss.1} parent=1 // pred_fallthru
      _
    %383 = sfence
    %384 = vsyncpa [#allocation5], 1

</llo_original>
